<compile_context>
chip_gen: v7x
topology: tpu7x:2x2x1
jax: 0.10.0
libtpu: 0.0.40
codegen_flags: <defaults>
</compile_context>

<pallas_src>
import functools

import jax
import jax.numpy as jnp
from jax.experimental import pallas as pl
from jax.experimental.pallas import tpu as pltpu

MARGIN = 2.0
LANE_W = 512          # lane-dense last dim, multiple of 128
MAX_TILE_ROWS = 1024  # ~2 MiB f32 per input tile; 2 in x 2 buf = 8 MiB
NUM_CORES = 2         # leading "parallel" axis (v7x megacore); no-op on 1-TC chips


def _cdiv(a, b):
    return -(-a // b)


def _round_up(a, b):
    return _cdiv(a, b) * b


def _contrastive_loss_kernel(yp_ref, y_ref, out_ref, acc_ref, *, margin):
    """grid = (core, step): per-core partial per-lane sums accumulate in VMEM."""
    i = pl.program_id(1)

    @pl.when(i == 0)
    def _init():
        acc_ref[...] = jnp.zeros_like(acc_ref)

    yp = yp_ref[...].astype(jnp.float32)
    y = y_ref[...].astype(jnp.float32)

    distance = 1.0 - yp
    pos = y * distance * distance
    hinge = jnp.maximum(margin - distance, 0.0)
    neg = (1.0 - y) * hinge * hinge
    vals = pos + neg                       # (tile_rows, LANE_W) f32

    tr, lw = vals.shape
    # Reduce only the leading (vreg-major) axis: pure VPU adds, keep lanes live.
    acc_ref[...] += vals.reshape(tr // 8, 8, lw).sum(axis=0)

    @pl.when(i == pl.num_programs(1) - 1)
    def _finalize():
        out_ref[0] = acc_ref[...]


def contrastive_loss(y_pred, y, margin=MARGIN,
                     lane_w=LANE_W, max_tile_rows=MAX_TILE_ROWS,
                     num_cores=NUM_CORES):
    assert y_pred.shape == y.shape

    n = int(y_pred.size)
    yp_flat = jnp.ravel(y_pred)
    y_flat = jnp.ravel(y)

    # Choose a lane-dense tiling; small inputs get small tiles, big inputs get
    # up to max_tile_rows x lane_w tiles.
    rows_total = _cdiv(n, lane_w)
    rows_per_core = _round_up(max(_cdiv(rows_total, num_cores), 8), 8)
    tile_rows = min(max_tile_rows, rows_per_core)
    steps = _cdiv(rows_per_core, tile_rows)
    rows_per_core = steps * tile_rows
    padded_rows = rows_per_core * num_cores
    padded_n = padded_rows * lane_w

    # Pad with y_pred=1, y=1 -> distance=0, pos=0, neg=0: contributes exactly 0.
    pad = padded_n - n
    yp_flat = jnp.pad(yp_flat, (0, pad), constant_values=1.0)
    y_flat = jnp.pad(y_flat, (0, pad), constant_values=1.0)
    yp2d = yp_flat.reshape(padded_rows, lane_w)
    y2d = y_flat.reshape(padded_rows, lane_w)

    # Explicit VMEM budget: 2 inputs x 2 buffers x tile + accumulator + output,
    # with headroom, capped well under v7x's 64 MiB physical VMEM.
    itemsize = jnp.dtype(y_pred.dtype).itemsize
    in_tile_bytes = tile_rows * lane_w * itemsize
    vmem_needed = 4 * in_tile_bytes + 4 * (8 * lane_w * 4)
    vmem_limit = int(min(max(2 * vmem_needed, 8 << 20), 32 << 20))

    kernel = functools.partial(_contrastive_loss_kernel, margin=float(margin))

    partials = pl.pallas_call(
        kernel,
        out_shape=jax.ShapeDtypeStruct((num_cores, 8, lane_w), jnp.float32),
        grid_spec=pltpu.PrefetchScalarGridSpec(
            num_scalar_prefetch=0,
            grid=(num_cores, steps),
            in_specs=[
                pl.BlockSpec((tile_rows, lane_w),
                             lambda c, i, s=steps: (c * s + i, 0)),
                pl.BlockSpec((tile_rows, lane_w),
                             lambda c, i, s=steps: (c * s + i, 0)),
            ],
            out_specs=pl.BlockSpec((1, 8, lane_w), lambda c, i: (c, 0, 0)),
            scratch_shapes=[pltpu.VMEM((8, lane_w), jnp.float32)],
        ),
        compiler_params=pltpu.CompilerParams(
            dimension_semantics=("parallel", "arbitrary"),
            vmem_limit_bytes=vmem_limit,
        ),
    )(yp2d, y2d)

    # Final cross-core / cross-lane reduction + mean over the UNPADDED count.
    return jnp.sum(partials) / jnp.float32(n)


def _reference(y_pred, y, margin=MARGIN):
    y_pred = y_pred.astype(jnp.float32)
    y = y.astype(jnp.float32)
    distance = 1.0 - y_pred
    return jnp.mean(
        y * distance ** 2
        + (1.0 - y) * jnp.maximum(margin - distance, 0.0) ** 2
    )


if __name__ == "__main__":
    key = jax.random.PRNGKey(0)
    k1, k2 = jax.random.split(key)

    B, F = 16, 128  # small, TPU-friendly shape
    # y_pred: similarity scores in roughly [-1, 1]; y: binary match labels.
    y_pred = jax.random.uniform(k1, (B, F), jnp.float32, minval=-1.0, maxval=1.0)
    y = jax.random.bernoulli(k2, 0.5, (B, F)).astype(jnp.float32)

    # f32 path
    loss = jax.block_until_ready(contrastive_loss(y_pred, y))
    ref = _reference(y_pred, y)
    assert jnp.allclose(loss, ref, rtol=1e-5, atol=1e-6), (loss, ref)

    # bf16 path (halves HBM traffic; kernel accumulates in f32)
    yp_bf = y_pred.astype(jnp.bfloat16)
    y_bf = y.astype(jnp.bfloat16)
    loss_bf = jax.block_until_ready(contrastive_loss(yp_bf, y_bf))
    ref_bf = _reference(yp_bf, y_bf)
    assert jnp.allclose(loss_bf, ref_bf, rtol=1e-3, atol=1e-5), (loss_bf, ref_bf)

    print("KERNEL_OK")
</pallas_src>

<mosaic_0001>
module attributes {stable_mosaic.version = 11 : i64} {
  func.func @_contrastive_loss_kernel(%arg0: i32, %arg1: i32, %arg2: memref<8x512xf32, #tpu.memory_space<vmem>>, %arg3: memref<8x512xf32, #tpu.memory_space<vmem>>, %arg4: memref<1x8x512xf32, #tpu.memory_space<vmem>>, %arg5: memref<8x512xf32, #tpu.memory_space<vmem>>) attributes {dimension_semantics = [#tpu.dimension_semantics<parallel>, #tpu.dimension_semantics<arbitrary>], iteration_bounds = array<i64: 2, 1>, scalar_prefetch = 0 : i64, scratch_operands = 1 : i64, tpu.core_type = #tpu.core_type<tc>, window_params = [{transform_indices = @transform_0, window_bounds = array<i64: 8, 512>}, {transform_indices = @transform_1, window_bounds = array<i64: 8, 512>}, {transform_indices = @transform_2, window_bounds = array<i64: 1, 8, 512>}]} {
    %c0_i32 = arith.constant 0 : i32
    %0 = arith.cmpi eq, %arg1, %c0_i32 : i32
    %1 = arith.extui %0 : i1 to i32
    %c0_i32_0 = arith.constant 0 : i32
    %2 = arith.cmpi ne, %1, %c0_i32_0 : i32
    scf.if %2 {
      %cst_14 = arith.constant 0.000000e+00 : f32
      %26 = vector.broadcast %cst_14 : f32 to vector<8x512xf32>
      %c0_15 = arith.constant 0 : index
      %c0_16 = arith.constant 0 : index
      %27 = vector.load %arg5[%c0_15, %c0_16] : memref<8x512xf32, #tpu.memory_space<vmem>>, vector<8x512xf32>
      tpu.vector_store %arg5[%c0_15, %c0_16], %26 {strides = array<i32>} : memref<8x512xf32, #tpu.memory_space<vmem>>, vector<8x512xf32>,
    } else {
    }
    %c0 = arith.constant 0 : index
    %c0_1 = arith.constant 0 : index
    %3 = vector.load %arg2[%c0, %c0_1] : memref<8x512xf32, #tpu.memory_space<vmem>>, vector<8x512xf32>
    %c0_2 = arith.constant 0 : index
    %c0_3 = arith.constant 0 : index
    %4 = vector.load %arg3[%c0_2, %c0_3] : memref<8x512xf32, #tpu.memory_space<vmem>>, vector<8x512xf32>
    %cst = arith.constant 1.000000e+00 : f32
    %5 = vector.broadcast %cst : f32 to vector<8x512xf32>
    %6 = arith.subf %5, %3 : vector<8x512xf32>
    %7 = arith.mulf %4, %6 : vector<8x512xf32>
    %8 = arith.mulf %7, %6 : vector<8x512xf32>
    %cst_4 = arith.constant 2.000000e+00 : f32
    %9 = vector.broadcast %cst_4 : f32 to vector<8x512xf32>
    %10 = arith.subf %9, %6 : vector<8x512xf32>
    %cst_5 = arith.constant 0.000000e+00 : f32
    %11 = vector.broadcast %cst_5 : f32 to vector<8x512xf32>
    %12 = arith.maximumf %10, %11 : vector<8x512xf32>
    %cst_6 = arith.constant 1.000000e+00 : f32
    %13 = vector.broadcast %cst_6 : f32 to vector<8x512xf32>
    %14 = arith.subf %13, %4 : vector<8x512xf32>
    %15 = arith.mulf %14, %12 : vector<8x512xf32>
    %16 = arith.mulf %15, %12 : vector<8x512xf32>
    %17 = arith.addf %8, %16 : vector<8x512xf32>
    %c0_7 = arith.constant 0 : index
    %c0_8 = arith.constant 0 : index
    %18 = vector.load %arg5[%c0_7, %c0_8] : memref<8x512xf32, #tpu.memory_space<vmem>>, vector<8x512xf32>
    %19 = vector.shape_cast %17 : vector<8x512xf32> to vector<1x8x512xf32>
    %cst_9 = arith.constant dense<0.000000e+00> : vector<8x512xf32>
    %20 = vector.multi_reduction <add>, %19, %cst_9 [0] : vector<1x8x512xf32> to vector<8x512xf32>
    %21 = arith.addf %18, %20 : vector<8x512xf32>
    %c0_10 = arith.constant 0 : index
    %c0_11 = arith.constant 0 : index
    %22 = vector.load %arg5[%c0_10, %c0_11] : memref<8x512xf32, #tpu.memory_space<vmem>>, vector<8x512xf32>
    tpu.vector_store %arg5[%c0_10, %c0_11], %21 {strides = array<i32>} : memref<8x512xf32, #tpu.memory_space<vmem>>, vector<8x512xf32>,
    %c0_i32_12 = arith.constant 0 : i32
    %23 = arith.cmpi eq, %arg1, %c0_i32_12 : i32
    %24 = arith.extui %23 : i1 to i32
    %c0_i32_13 = arith.constant 0 : i32
    %25 = arith.cmpi ne, %24, %c0_i32_13 : i32
    scf.if %25 {
      %c0_14 = arith.constant 0 : index
      %c0_15 = arith.constant 0 : index
      %26 = vector.load %arg5[%c0_14, %c0_15] : memref<8x512xf32, #tpu.memory_space<vmem>>, vector<8x512xf32>
      %c0_16 = arith.constant 0 : index
      %c0_17 = arith.constant 0 : index
      %c0_18 = arith.constant 0 : index
      %27 = vector.load %arg4[%c0_16, %c0_17, %c0_18] : memref<1x8x512xf32, #tpu.memory_space<vmem>>, vector<1x8x512xf32>
      %28 = vector.shape_cast %27 : vector<1x8x512xf32> to vector<8x512xf32>
      %29 = vector.shape_cast %26 : vector<8x512xf32> to vector<1x8x512xf32>
      tpu.vector_store %arg4[%c0_16, %c0_17, %c0_18], %29 {strides = array<i32>} : memref<1x8x512xf32, #tpu.memory_space<vmem>>, vector<1x8x512xf32>,
    } else {
    }
    return
  }
  func.func @transform_0(%arg0: i32, %arg1: i32) -> (i32, i32) {
    %c1_i32 = arith.constant 1 : i32
    %0 = arith.muli %arg0, %c1_i32 : i32
    %1 = arith.addi %0, %arg1 : i32
    %c0_i32 = arith.constant 0 : i32
    %c0_i32_0 = arith.constant 0 : i32
    return %1, %c0_i32 : i32, i32
  }
  func.func @transform_1(%arg0: i32, %arg1: i32) -> (i32, i32) {
    %c1_i32 = arith.constant 1 : i32
    %0 = arith.muli %arg0, %c1_i32 : i32
    %1 = arith.addi %0, %arg1 : i32
    %c0_i32 = arith.constant 0 : i32
    %c0_i32_0 = arith.constant 0 : i32
    return %1, %c0_i32 : i32, i32
  }
  func.func @transform_2(%arg0: i32, %arg1: i32) -> (i32, i32, i32) {
    %c0_i32 = arith.constant 0 : i32
    %c0_i32_0 = arith.constant 0 : i32
    %c0_i32_1 = arith.constant 0 : i32
    return %arg0, %c0_i32, %c0_i32_0 : i32, i32, i32
  }
}

</mosaic_0001>

<llo_original>
// kernel: tpu_custom_call.1
$region0: #{tpu_custom_call.1}
  #allocation0 [shape = 'u32[]', space=smem, size = 0x4, offset = 0x4, fixed_abs, tag = 'smem constant byte address 0x4 - core index']
  #allocation1 [shape = 'u32[144,128]{1,0:T(1,128)}', space=vmem, size = 0x12000, scoped, tag = 'internal scratch']
  #allocation2 [shape = 'f32[8,512]{1,0:T(8,128)}', space=vmem, size = 0x4000, scoped, tag = 'scratch operand']
  %s0 = inlined_call_operand.hbm [shape: f32[16,512], index: 0, kind: input, shape index: {}]
  %s1 = inlined_call_operand.hbm [shape: f32[16,512], index: 1, kind: input, shape index: {}]
  %s2 = inlined_call_operand.hbm [shape: f32[2,8,512], index: 2, kind: output, shape index: {}]
  %s3 = sld [smem:[#allocation0]]
  $region57: #{tpu_custom_call.1} parent=0
    _
  %s5 = ssub.s32 1, %s3
  %s6 = scalar_select 0, %s5, %s3
  $region1: #{tpu_custom_call.1} parent=0
    #allocation3 [shape = 'u8[32768]{0}', space=vmem, size = 0x8000, scoped, tag = 'input window, operand 0']
    #allocation4 [shape = 's32[2]{0}', space=sflag, size = 0x8, scoped, tag = 'scoped memory for tpu_custom_call.1']
    #allocation5 [shape = 's32[2]{0}', space=sflag, size = 0x8, scoped, tag = 'scoped memory for tpu_custom_call.1']
    #allocation6 [shape = 'u8[32768]{0}', space=vmem, size = 0x8000, scoped, tag = 'input window, operand 1']
    #allocation7 [shape = 's32[2]{0}', space=sflag, size = 0x8, scoped, tag = 'scoped memory for tpu_custom_call.1']
    #allocation8 [shape = 'u8[32768]{0}', space=vmem, size = 0x8000, scoped, tag = 'output window, operand 0']
    %7 = vsyncpa [#allocation4], 0
    %s8 = scalar_lea.sflag [#allocation4], 1
    %9 = vsyncpa %s8, 0
    %10 = vsyncpa [#allocation7], 0
    %s11 = scalar_lea.sflag [#allocation7], 1
    %12 = vsyncpa %s11, 0
    %13 = vsyncpa [#allocation5], 0
    %s14 = scalar_lea.sflag [#allocation5], 1
    %15 = vsyncpa %s14, 0
    loop: start=0, step=1, limit=4
    $region2: #{tpu_custom_call.1} parent=1 // loop_pre_header
      _
    $region3: #{tpu_custom_call.1} parent=1 // loop_header
      %s17 = sphi 0, %s21
      %p18 = scmp.ge.s32.totalorder %s17, 4
      %s24 = sphi 0, %s36
      %s25 = sphi 0, %s32
      %s26 = sphi 0, %s24
      %s27 = sphi 0, %s25
      %s28 = sphi 0, %s26
      %s29 = sphi 0, %s27
      %s41 = sphi 0, %s43
      %s44 = sphi 0, %s41
      %s45 = sphi 0, %s44
      %s61 = sphi 0, %s45
      %s69 = sphi 0, %s71
      %s72 = sphi 0, %s69
      %s73 = sphi 0, %s72
      %s89 = sphi 0, %s73
      %s95 = sphi 0, %s97
      %s98 = sphi 0, %s95
      %s99 = sphi 0, %s98
      %s115 = sphi 0, %s99
    $region4: #{tpu_custom_call.1} parent=1 // loop_header_branch
      %20 = sbr.rel (%p18) target = $region8
    $region5: #{tpu_custom_call.1} parent=1 // loop_body
      %s22 = ssub.s32 %s17, 1
      %s23 = ssub.s32 %s17, 2
      %s30 = sadd.s32 1, %s25
      %p31 = scmp.ge.s32.totalorder %s30, 1
      %s32 = scalar_select %p31, 0, %s30
      %s33 = sadd.s32 1, %s24
      %s34 = scalar_select %p31, %s33, %s24
      %p35 = scmp.ge.s32.totalorder %s34, 2
      %s36 = scalar_select %p35, 0, %s34
      %s37 = sadd.s32 %s24, %s25
      %s38 = sadd.s32 %s36, %s32
      %s39 = ssub.s32 %s37, %s38
      %p40 = scmp.eq.s32.totalorder %s39, 0
      %s42 = sadd.s32 %s41, 1
      %s43 = scalar_select %p40, %s41, %s42
      %p46 = pneg %p40
      %p47 = scmp.eq.s32.totalorder %s17, 1
      %p48 = por %p46, %p47
      %p49 = scmp.ne.s32.totalorder %s41, %s44
      %p50 = scmp.eq.s32.totalorder %s17, 0
      %p51 = por %p49, %p50
      %p52 = scmp.ne.s32.totalorder %s41, %s44
      %p53 = scmp.eq.s32.totalorder %s22, 1
      %p54 = por %p52, %p53
      %p55 = scmp.ne.s32.totalorder %s44, %s45
      %p56 = scmp.eq.s32.totalorder %s22, 0
      %p57 = por %p55, %p56
      %p58 = scmp.ne.s32.totalorder %s44, %s45
      %p59 = scmp.eq.s32.totalorder %s23, 1
      %p60 = por %p58, %p59
      %p62 = scmp.ne.s32.totalorder %s45, %s61
      %p63 = scmp.eq.s32.totalorder %s23, 0
      %p64 = por %p62, %p63
      %s65 = sadd.s32 %s24, %s25
      %s66 = sadd.s32 %s36, %s32
      %s67 = ssub.s32 %s65, %s66
      %p68 = scmp.eq.s32.totalorder %s67, 0
      %s70 = sadd.s32 %s69, 1
      %s71 = scalar_select %p68, %s69, %s70
      %p74 = pneg %p68
      %p75 = scmp.eq.s32.totalorder %s17, 1
      %p76 = por %p74, %p75
      %p77 = scmp.ne.s32.totalorder %s69, %s72
      %p78 = scmp.eq.s32.totalorder %s17, 0
      %p79 = por %p77, %p78
      %p80 = scmp.ne.s32.totalorder %s69, %s72
      %p81 = scmp.eq.s32.totalorder %s22, 1
      %p82 = por %p80, %p81
      %p83 = scmp.ne.s32.totalorder %s72, %s73
      %p84 = scmp.eq.s32.totalorder %s22, 0
      %p85 = por %p83, %p84
      %p86 = scmp.ne.s32.totalorder %s72, %s73
      %p87 = scmp.eq.s32.totalorder %s23, 1
      %p88 = por %p86, %p87
      %p90 = scmp.ne.s32.totalorder %s73, %s89
      %p91 = scmp.eq.s32.totalorder %s23, 0
      %p92 = por %p90, %p91
      %s93 = ssub.s32 %s24, %s36
      %p94 = scmp.eq.s32.totalorder %s93, 0
      %s96 = sadd.s32 %s95, 1
      %s97 = scalar_select %p94, %s95, %s96
      %p100 = pneg %p94
      %p101 = scmp.eq.s32.totalorder %s17, 1
      %p102 = por %p100, %p101
      %p103 = scmp.ne.s32.totalorder %s95, %s98
      %p104 = scmp.eq.s32.totalorder %s17, 0
      %p105 = por %p103, %p104
      %p106 = scmp.ne.s32.totalorder %s95, %s98
      %p107 = scmp.eq.s32.totalorder %s22, 1
      %p108 = por %p106, %p107
      %p109 = scmp.ne.s32.totalorder %s98, %s99
      %p110 = scmp.eq.s32.totalorder %s22, 0
      %p111 = por %p109, %p110
      %p112 = scmp.ne.s32.totalorder %s98, %s99
      %p113 = scmp.eq.s32.totalorder %s23, 1
      %p114 = por %p112, %p113
      %p116 = scmp.ne.s32.totalorder %s99, %s115
      %p117 = scmp.eq.s32.totalorder %s23, 0
      %p118 = por %p116, %p117
      %p119 = scmp.le.s32.totalorder 1, %s17
      %p120 = scmp.lt.s32.totalorder %s17, 3
      %p121 = pnand %p119, %p120
      %p122 = pneg %p121
      // Predicated region
      $region9: #{tpu_custom_call.1} parent=5 // pred_check
        _
      $region10: #{tpu_custom_call.1} parent=5 // pred_check_branch
        %124 = sbr.rel (%p121) target = $region12
      $region11: #{tpu_custom_call.1} parent=5 // pred_region
        %s125 = ssub.s32 %s17, 1
      $region12: #{tpu_custom_call.1} parent=5 // pred_fallthru
        _
      %p126 = scmp.lt.s32.totalorder %s17, 2
      // Predicated region
      $region13: #{tpu_custom_call.1} parent=5 // pred_check
        %p127 = pneg %p126
      $region14: #{tpu_custom_call.1} parent=5 // pred_check_branch
        %129 = sbr.rel (%p127) target = $region16
      $region15: #{tpu_custom_call.1} parent=5 // pred_region
        // Predicated region
        $region17: #{tpu_custom_call.1} parent=15 // pred_check
          %p130 = pneg %p51
        $region18: #{tpu_custom_call.1} parent=15 // pred_check_branch
          %132 = sbr.rel (%p130) target = $region20
        $region19: #{tpu_custom_call.1} parent=15 // pred_region
          %s133 = sand.u32 %s41, 1
          %s134 = scalar_lea.sflag [#allocation4], %s133
          %s135 = sand.u32 %s41, 1
          %s136 = smul.addr %s135, 32
          %s137 = scalar_lea.vmem [#allocation3], %s136
          %s138 = sadd.s32 %s24, %s25
          %s140 = ssub.s32 512, 512
          %141 = vsyncadd %s134, %s140
          %s142 = smul.addr %s138, 4
          %s143 = smul.addr %s142, 128
          %s144 = scalar_lea.hbm %s0, %s143
          %s146 = sshll.u32 %s137, 4
          %s147 = int_to_ptr.vmem [resolvable:$true] %s146
          %149 = dma.hbm_to_vmem [thread:$0]  %s144, 512, %s147, %s134
        $region20: #{tpu_custom_call.1} parent=15 // pred_fallthru
          _
        // Predicated region
        $region21: #{tpu_custom_call.1} parent=15 // pred_check
          %p150 = pneg %p79
        $region22: #{tpu_custom_call.1} parent=15 // pred_check_branch
          %152 = sbr.rel (%p150) target = $region24
        $region23: #{tpu_custom_call.1} parent=15 // pred_region
          %s153 = sand.u32 %s69, 1
          %s154 = scalar_lea.sflag [#allocation7], %s153
          %s155 = sand.u32 %s69, 1
          %s156 = smul.addr %s155, 32
          %s157 = scalar_lea.vmem [#allocation6], %s156
          %s158 = sadd.s32 %s24, %s25
          %s160 = ssub.s32 512, 512
          %161 = vsyncadd %s154, %s160
          %s162 = smul.addr %s158, 4
          %s163 = smul.addr %s162, 128
          %s164 = scalar_lea.hbm %s1, %s163
          %s166 = sshll.u32 %s157, 4
          %s167 = int_to_ptr.vmem [resolvable:$true] %s166
          %169 = dma.hbm_to_vmem [thread:$0]  %s164, 512, %s167, %s154
        $region24: #{tpu_custom_call.1} parent=15 // pred_fallthru
          _
      $region16: #{tpu_custom_call.1} parent=5 // pred_fallthru
        _
      %p170 = scmp.le.s32.totalorder 1, %s17
      %p171 = scmp.lt.s32.totalorder %s17, 3
      %p172 = pnand %p170, %p171
      %p173 = pneg %p172
      // Predicated region
      $region25: #{tpu_custom_call.1} parent=5 // pred_check
        _
      $region26: #{tpu_custom_call.1} parent=5 // pred_check_branch
        %175 = sbr.rel (%p172) target = $region28
      $region27: #{tpu_custom_call.1} parent=5 // pred_region
        %s176 = ssub.s32 %s17, 1
        %s177 = sand.u32 %s44, 1
        %s178 = scalar_lea.sflag [#allocation4], %s177
        %s179 = sand.u32 %s44, 1
        %s180 = smul.addr %s179, 32
        %s181 = scalar_lea.vmem [#allocation3], %s180
        // Predicated region
        $region29: #{tpu_custom_call.1} parent=27 // pred_check
          %p182 = pneg %p57
        $region30: #{tpu_custom_call.1} parent=27 // pred_check_branch
          %184 = sbr.rel (%p182) target = $region32
        $region31: #{tpu_custom_call.1} parent=27 // pred_region
          %185 = dma.done %s178, 512
        $region32: #{tpu_custom_call.1} parent=27 // pred_fallthru
          _
        %s186 = sand.u32 %s72, 1
        %s187 = scalar_lea.sflag [#allocation7], %s186
        %s188 = sand.u32 %s72, 1
        %s189 = smul.addr %s188, 32
        %s190 = scalar_lea.vmem [#allocation6], %s189
        // Predicated region
        $region33: #{tpu_custom_call.1} parent=27 // pred_check
          %p191 = pneg %p85
        $region34: #{tpu_custom_call.1} parent=27 // pred_check_branch
          %193 = sbr.rel (%p191) target = $region36
        $region35: #{tpu_custom_call.1} parent=27 // pred_region
          %194 = dma.done %s187, 512
        $region36: #{tpu_custom_call.1} parent=27 // pred_fallthru
          _
        %s195 = sand.u32 %s44, 1
        %s196 = scalar_lea.sflag [#allocation4], %s195
        %s197 = sand.u32 %s44, 1
        %s198 = smul.addr %s197, 32
        %s199 = scalar_lea.vmem [#allocation3], %s198
        %p200 = pneg %p57
        %p201 = pneg %p54
        %s202 = sand.u32 %s72, 1
        %s203 = scalar_lea.sflag [#allocation7], %s202
        %s204 = sand.u32 %s72, 1
        %s205 = smul.addr %s204, 32
        %s206 = scalar_lea.vmem [#allocation6], %s205
        %p207 = pneg %p85
        %p208 = pneg %p82
        %p209 = pneg %p111
        %p210 = pneg %p108
        %s211 = sand.u32 %s98, 1
        %s212 = scalar_lea.sflag [#allocation5], %s211
        %s213 = sand.u32 %s98, 1
        %s214 = smul.addr %s213, 32
        %s215 = scalar_lea.vmem [#allocation8], %s214
        %s216 = sadd.s32 %s26, %s27
        %s217 = sadd.s32 %s26, %s27
        %p218 = scmp.eq.s32.totalorder %s27, 0
        // Predicated region
        $region37: #{tpu_custom_call.1} parent=27 // pred_check
          %p219 = pneg %p218
        $region38: #{tpu_custom_call.1} parent=27 // pred_check_branch
          %221 = sbr.rel (%p219) target = $region40
        $region39: #{tpu_custom_call.1} parent=27 // pred_region
          %222 = vst [vmem:[#allocation2] sm:$0xff] 0.0
          %223 = vst [vmem:[#allocation2 + $0x8] sm:$0xff] 0.0
          %224 = vst [vmem:[#allocation2 + $0x10] sm:$0xff] 0.0
          %225 = vst [vmem:[#allocation2 + $0x18] sm:$0xff] 0.0
        $region40: #{tpu_custom_call.1} parent=27 // pred_fallthru
          _
        %v226 = vld [vmem:[%s181] sm:$0xff]
        %v227 = vld [vmem:[%s181 + $0x8] sm:$0xff]
        %v228 = vld [vmem:[%s181 + $0x10] sm:$0xff]
        %v229 = vld [vmem:[%s181 + $0x18] sm:$0xff]
        %v230 = vld [vmem:[%s190] sm:$0xff]
        %v231 = vld [vmem:[%s190 + $0x8] sm:$0xff]
        %v232 = vld [vmem:[%s190 + $0x10] sm:$0xff]
        %v233 = vld [vmem:[%s190 + $0x18] sm:$0xff]
        %v234 = vsub.f32 1.0, %v226
        %v235 = vsub.f32 1.0, %v227
        %v236 = vsub.f32 1.0, %v228
        %v237 = vsub.f32 1.0, %v229
        %v238 = vmul.f32 %v230, %v234
        %v239 = vmul.f32 %v231, %v235
        %v240 = vmul.f32 %v232, %v236
        %v241 = vmul.f32 %v233, %v237
        %v242 = vmul.f32 %v238, %v234
        %v243 = vmul.f32 %v239, %v235
        %v244 = vmul.f32 %v240, %v236
        %v245 = vmul.f32 %v241, %v237
        %v246 = vsub.f32 2.0, %v234
        %v247 = vsub.f32 2.0, %v235
        %v248 = vsub.f32 2.0, %v236
        %v249 = vsub.f32 2.0, %v237
        %v250 = vmax.f32 %v246, 0.0
        %v251 = vmax.f32 %v247, 0.0
        %v252 = vmax.f32 %v248, 0.0
        %v253 = vmax.f32 %v249, 0.0
        %v254 = vsub.f32 1.0, %v230
        %v255 = vsub.f32 1.0, %v231
        %v256 = vsub.f32 1.0, %v232
        %v257 = vsub.f32 1.0, %v233
        %v258 = vmul.f32 %v254, %v250
        %v259 = vmul.f32 %v255, %v251
        %v260 = vmul.f32 %v256, %v252
        %v261 = vmul.f32 %v257, %v253
        %v262 = vmul.f32 %v258, %v250
        %v263 = vmul.f32 %v259, %v251
        %v264 = vmul.f32 %v260, %v252
        %v265 = vmul.f32 %v261, %v253
        %v266 = vadd.f32 %v242, %v262
        %v267 = vadd.f32 %v243, %v263
        %v268 = vadd.f32 %v244, %v264
        %v269 = vadd.f32 %v245, %v265
        %v270 = vld [vmem:[#allocation2] sm:$0xff]
        %v271 = vld [vmem:[#allocation2 + $0x8] sm:$0xff]
        %v272 = vld [vmem:[#allocation2 + $0x10] sm:$0xff]
        %v273 = vld [vmem:[#allocation2 + $0x18] sm:$0xff]
        %v274 = vadd.f32 %v266, 0.0
        %v275 = vadd.f32 %v267, 0.0
        %v276 = vadd.f32 %v268, 0.0
        %v277 = vadd.f32 %v269, 0.0
        %v278 = vadd.f32 %v270, %v274
        %v279 = vadd.f32 %v271, %v275
        %v280 = vadd.f32 %v272, %v276
        %v281 = vadd.f32 %v273, %v277
        %282 = vst [vmem:[#allocation2] sm:$0xff] %v278
        %283 = vst [vmem:[#allocation2 + $0x8] sm:$0xff] %v279
        %284 = vst [vmem:[#allocation2 + $0x10] sm:$0xff] %v280
        %285 = vst [vmem:[#allocation2 + $0x18] sm:$0xff] %v281
        // Predicated region
        $region41: #{tpu_custom_call.1} parent=27 // pred_check
          %p286 = pneg %p218
        $region42: #{tpu_custom_call.1} parent=27 // pred_check_branch
          %288 = sbr.rel (%p286) target = $region44
        $region43: #{tpu_custom_call.1} parent=27 // pred_region
          %v289 = vld [vmem:[#allocation2] sm:$0xff]
          %v290 = vld [vmem:[#allocation2 + $0x8] sm:$0xff]
          %v291 = vld [vmem:[#allocation2 + $0x10] sm:$0xff]
          %v292 = vld [vmem:[#allocation2 + $0x18] sm:$0xff]
          %293 = vst [vmem:[%s215] sm:$0xff] %v289
          %294 = vst [vmem:[%s215 + $0x8] sm:$0xff] %v290
          %295 = vst [vmem:[%s215 + $0x10] sm:$0xff] %v291
          %296 = vst [vmem:[%s215 + $0x18] sm:$0xff] %v292
        $region44: #{tpu_custom_call.1} parent=27 // pred_fallthru
          _
        %s297 = sand.u32 %s98, 1
        %s298 = scalar_lea.sflag [#allocation5], %s297
        %s299 = sand.u32 %s98, 1
        %s300 = smul.addr %s299, 32
        %s301 = scalar_lea.vmem [#allocation8], %s300
        // Predicated region
        $region45: #{tpu_custom_call.1} parent=27 // pred_check
          %p302 = pneg %p108
        $region46: #{tpu_custom_call.1} parent=27 // pred_check_branch
          %304 = sbr.rel (%p302) target = $region48
        $region47: #{tpu_custom_call.1} parent=27 // pred_region
          %s306 = ssub.s32 512, 512
          %307 = vsyncadd %s298, %s306
          %s308 = smul.addr %s26, 4
          %s309 = smul.addr %s308, 128
          %s310 = scalar_lea.hbm %s2, %s309
          %s312 = sshll.u32 %s301, 4
          %s313 = int_to_ptr.vmem [resolvable:$true] %s312
          %315 = dma.vmem_to_hbm [thread:$0]  %s313, 512, %s310, %s298
        $region48: #{tpu_custom_call.1} parent=27 // pred_fallthru
          _
      $region28: #{tpu_custom_call.1} parent=5 // pred_fallthru
        _
      %p316 = scmp.le.s32.totalorder 2, %s17
      // Predicated region
      $region49: #{tpu_custom_call.1} parent=5 // pred_check
        %p317 = pneg %p316
      $region50: #{tpu_custom_call.1} parent=5 // pred_check_branch
        %319 = sbr.rel (%p317) target = $region52
      $region51: #{tpu_custom_call.1} parent=5 // pred_region
        %s320 = ssub.s32 %s17, 2
        // Predicated region
        $region53: #{tpu_custom_call.1} parent=51 // pred_check
          %p321 = pneg %p114
        $region54: #{tpu_custom_call.1} parent=51 // pred_check_branch
          %323 = sbr.rel (%p321) target = $region56
        $region55: #{tpu_custom_call.1} parent=51 // pred_region
          %s324 = sand.u32 %s99, 1
          %s325 = scalar_lea.sflag [#allocation5], %s324
          %s326 = sand.u32 %s99, 1
          %s327 = smul.addr %s326, 32
          %s328 = scalar_lea.vmem [#allocation8], %s327
          %329 = dma.done %s325, 512
        $region56: #{tpu_custom_call.1} parent=51 // pred_fallthru
          _
      $region52: #{tpu_custom_call.1} parent=5 // pred_fallthru
        _
    $region6: #{tpu_custom_call.1} parent=1 // loop_footer
      %s21 = sadd.s32 1, %s17
    $region7: #{tpu_custom_call.1} parent=1 // loop_footer_branch
      %16 = sbr.rel target = $region3
    $region8: #{tpu_custom_call.1} parent=1 // loop_exit
      _
    %330 = vsyncpa [#allocation4], 1
    %s331 = scalar_lea.sflag [#allocation4], 1
    %332 = vsyncpa %s331, 1
    %333 = vsyncpa [#allocation7], 1
    %s334 = scalar_lea.sflag [#allocation7], 1
    %335 = vsyncpa %s334, 1
    %336 = vsyncpa [#allocation5], 1
    %s337 = scalar_lea.sflag [#allocation5], 1
    %338 = vsyncpa %s337, 1

</llo_original>
